<compile_context>
chip_gen: v6e
topology: v6e:2x2x1
jax: 0.10.0
libtpu: 0.0.40
codegen_flags: <defaults>
</compile_context>

<pallas_src>
import functools

import jax
import jax.numpy as jnp
from jax import lax
from jax.experimental import pallas as pl
from jax.experimental.pallas import tpu as pltpu


# ---------------------------------------------------------------------------
# Tiling budget: ~3 MiB per block.  With double-buffered in + out pipeline
# buffers plus fp32 temporaries the live VMEM stays well under the raised
# 48 MiB scoped limit (fits v5e/v6e 128 MiB and v7x 64 MiB physical VMEM).
# ---------------------------------------------------------------------------
_TARGET_BLOCK_BYTES = 3 * 1024 * 1024
_VMEM_LIMIT_BYTES = 48 * 1024 * 1024


def _cdiv(a, b):
    return -(-a // b)


def _round_up(x, m):
    return _cdiv(x, m) * m


def _pick_row_tile(n_rows, row_bytes):
    """Largest row tile (multiple of 8, or the full extent) within budget."""
    cap = max(8, (_TARGET_BLOCK_BYTES // max(row_bytes, 1)) // 8 * 8)
    if n_rows <= cap:
        # Whole slab fits in one block; split in two so a megacore part (v7x)
        # still sees >= 2 grid steps when there is enough work.
        if n_rows >= 16:
            half = _round_up(_cdiv(n_rows, 2), 8)
            if half < n_rows:
                return half
        return n_rows
    return cap


def _pick_lane_tile(n_lanes, col_bytes):
    """Largest lane tile (multiple of 128, or the full extent) within budget."""
    cap = max(128, (_TARGET_BLOCK_BYTES // max(col_bytes, 1)) // 128 * 128)
    if n_lanes <= cap:
        if n_lanes >= 256:
            half = _round_up(_cdiv(n_lanes, 2), 128)
            if half < n_lanes:
                return half
        return n_lanes
    return cap


# ---------------------------------------------------------------------------
# Kernels
# ---------------------------------------------------------------------------
def _ln_lastdim_kernel(x_ref, w_ref, b_ref, o_ref, *, eps):
    # x_ref: (tn, C); w_ref/b_ref: (1, C).  Normalize each row over C.
    x = x_ref[...].astype(jnp.float32)
    mean = jnp.mean(x, axis=-1, keepdims=True)
    xc = x - mean
    var = jnp.mean(xc * xc, axis=-1, keepdims=True)   # biased var (matches torch)
    y = xc * lax.rsqrt(var + eps)
    w = w_ref[...].astype(jnp.float32)
    b = b_ref[...].astype(jnp.float32)
    o_ref[...] = (y * w + b).astype(o_ref.dtype)


def _segmented_sum(x, m):
    """Per-row sums over contiguous lane groups, broadcast back onto each group.

    m is the (L, L) block-diagonal 0/1 matrix.  The hi/lo split keeps the
    result ~f32-accurate even if the MXU rounds f32 inputs to bf16 internally
    (hi is exactly bf16-representable; lo carries the residual)."""
    hi = x.astype(jnp.bfloat16).astype(jnp.float32)
    lo = x - hi
    return (jnp.dot(hi, m, preferred_element_type=jnp.float32)
            + jnp.dot(lo, m, preferred_element_type=jnp.float32))


def _ln_packed_kernel(x_ref, w_ref, b_ref, m_ref, o_ref, *, c, eps):
    # x_ref: (tn, 128) -- each row packs 128 // c logical rows of width c.
    x = x_ref[...].astype(jnp.float32)
    m = m_ref[...]
    inv_c = jnp.float32(1.0 / c)
    mean = _segmented_sum(x, m) * inv_c
    xc = x - mean
    var = _segmented_sum(xc * xc, m) * inv_c
    y = xc * lax.rsqrt(var + eps)
    w = w_ref[...].astype(jnp.float32)
    b = b_ref[...].astype(jnp.float32)
    o_ref[...] = (y * w + b).astype(o_ref.dtype)


def _ln_channel_kernel(x_ref, w_ref, b_ref, o_ref, *, eps):
    # x_ref/o_ref: (C, t_hw) (batch dim squeezed).  Reduce over C (sublanes);
    # H*W sits on the lane axis -> lane-dense stores for free.
    x = x_ref[...].astype(jnp.float32)
    mean = jnp.mean(x, axis=0, keepdims=True)
    xc = x - mean
    var = jnp.mean(xc * xc, axis=0, keepdims=True)
    y = xc * lax.rsqrt(var + eps)
    w = w_ref[...].astype(jnp.float32)    # (C, 1)
    b = b_ref[...].astype(jnp.float32)
    o_ref[...] = (y * w + b).astype(o_ref.dtype)


# ---------------------------------------------------------------------------
# Wrappers
# ---------------------------------------------------------------------------
def _ln_rows(x2d, weight, bias, eps):
    """LayerNorm over the last dim of a (N, C) slab."""
    N, C = x2d.shape
    k = 128 // C if (C < 128 and 128 % C == 0) else 1

    if k > 1 and N % k == 0:
        # Lane-dense packed path: view (N, C) as (N//k, 128).
        Np, L = N // k, k * C
        xp = x2d.reshape(Np, L)
        wp = jnp.tile(weight.reshape(-1), k).reshape(1, L)
        bp = jnp.tile(bias.reshape(-1), k).reshape(1, L)
        gid = jnp.arange(L, dtype=jnp.int32) // C
        m = (gid[:, None] == gid[None, :]).astype(jnp.float32)   # block-diag 0/1

        tn = _pick_row_tile(Np, L * 4)
        grid = (pl.cdiv(Np, tn),)
        yp = pl.pallas_call(
            functools.partial(_ln_packed_kernel, c=C, eps=eps),
            out_shape=jax.ShapeDtypeStruct((Np, L), x2d.dtype),
            grid_spec=pltpu.PrefetchScalarGridSpec(
                num_scalar_prefetch=0,
                grid=grid,
                in_specs=[
                    pl.BlockSpec((tn, L), lambda i: (i, 0)),
                    pl.BlockSpec((1, L), lambda i: (0, 0)),
                    pl.BlockSpec((1, L), lambda i: (0, 0)),
                    pl.BlockSpec((L, L), lambda i: (0, 0)),
                ],
                out_specs=pl.BlockSpec((tn, L), lambda i: (i, 0)),
            ),
            compiler_params=pltpu.CompilerParams(
                dimension_semantics=("parallel",),
                vmem_limit_bytes=_VMEM_LIMIT_BYTES,
            ),
        )(xp, wp, bp, m)
        return yp.reshape(N, C)

    # Fallback: C on the lane axis (C >= 128, or packing not possible).
    padded_row_bytes = _round_up(C, 128) * 4
    tn = _pick_row_tile(N, padded_row_bytes)
    grid = (pl.cdiv(N, tn),)
    w2 = weight.reshape(1, C)
    b2 = bias.reshape(1, C)
    return pl.pallas_call(
        functools.partial(_ln_lastdim_kernel, eps=eps),
        out_shape=jax.ShapeDtypeStruct((N, C), x2d.dtype),
        grid_spec=pltpu.PrefetchScalarGridSpec(
            num_scalar_prefetch=0,
            grid=grid,
            in_specs=[
                pl.BlockSpec((tn, C), lambda i: (i, 0)),
                pl.BlockSpec((1, C), lambda i: (0, 0)),
                pl.BlockSpec((1, C), lambda i: (0, 0)),
            ],
            out_specs=pl.BlockSpec((tn, C), lambda i: (i, 0)),
        ),
        compiler_params=pltpu.CompilerParams(
            dimension_semantics=("parallel",),
            vmem_limit_bytes=_VMEM_LIMIT_BYTES,
        ),
    )(x2d, w2, b2)


def _ln_channels_first(x, weight, bias, eps):
    """LayerNorm over the channel axis of (B, C, H, W) -- no transposes."""
    B, C, H, W = x.shape
    HW = H * W
    x3 = x.reshape(B, C, HW)                       # contiguous merge, layout only
    col_bytes = _round_up(C, 8) * 4
    t_hw = _pick_lane_tile(HW, col_bytes)
    grid = (B, pl.cdiv(HW, t_hw))
    w2 = weight.reshape(C, 1)
    b2 = bias.reshape(C, 1)
    y3 = pl.pallas_call(
        functools.partial(_ln_channel_kernel, eps=eps),
        out_shape=jax.ShapeDtypeStruct((B, C, HW), x.dtype),
        grid_spec=pltpu.PrefetchScalarGridSpec(
            num_scalar_prefetch=0,
            grid=grid,
            in_specs=[
                pl.BlockSpec((None, C, t_hw), lambda b, j: (b, 0, j)),
                pl.BlockSpec((C, 1), lambda b, j: (0, 0)),
                pl.BlockSpec((C, 1), lambda b, j: (0, 0)),
            ],
            out_specs=pl.BlockSpec((None, C, t_hw), lambda b, j: (b, 0, j)),
        ),
        compiler_params=pltpu.CompilerParams(
            dimension_semantics=("parallel", "parallel"),
            vmem_limit_bytes=_VMEM_LIMIT_BYTES,
        ),
    )(x3, w2, b2)
    return y3.reshape(B, C, H, W)


def layer_norm(x, weight, bias, *, eps=1e-6, data_format="channels_last"):
    """Matches models/IFBlend.py::LayerNorm.forward (eps defaults to 1e-6 as in
    the module).

    channels_last : x is (..., C)        -> F.layer_norm over the last dim
    channels_first: x is (B, C, H, W)    -> normalize over the channel dim
    """
    if data_format not in ("channels_last", "channels_first"):
        raise NotImplementedError
    if data_format == "channels_last":
        C = x.shape[-1]
        lead = x.shape[:-1]
        y2 = _ln_rows(x.reshape(-1, C), weight, bias, eps)
        return y2.reshape(*lead, C)
    else:
        return _ln_channels_first(x, weight, bias, eps)


# ---------------------------------------------------------------------------
# Reference + self-test
# ---------------------------------------------------------------------------
def _reference_layer_norm(x, weight, bias, eps, data_format):
    if data_format == "channels_last":
        u = jnp.mean(x, axis=-1, keepdims=True)
        s = jnp.mean((x - u) ** 2, axis=-1, keepdims=True)
        xn = (x - u) / jnp.sqrt(s + eps)
        return xn * weight + bias
    else:
        u = jnp.mean(x, axis=1, keepdims=True)
        s = jnp.mean((x - u) ** 2, axis=1, keepdims=True)
        xn = (x - u) / jnp.sqrt(s + eps)
        return weight[None, :, None, None] * xn + bias[None, :, None, None]


if __name__ == "__main__":
    key = jax.random.PRNGKey(0)
    B, C, H, W = 2, 32, 16, 16
    eps = 1e-6

    # Module init is ones/zeros; perturb slightly so the affine part is exercised.
    weight = jnp.ones((C,), jnp.float32) + 0.01 * jnp.arange(C, dtype=jnp.float32)
    bias = jnp.zeros((C,), jnp.float32) + 0.001 * jnp.arange(C, dtype=jnp.float32)

    k1, k2 = jax.random.split(key)

    # channels_first path (NCHW)
    x_cf = jax.random.normal(k1, (B, C, H, W), jnp.float32)
    y_cf = jax.block_until_ready(
        layer_norm(x_cf, weight, bias, eps=eps, data_format="channels_first"))
    ref_cf = _reference_layer_norm(x_cf, weight, bias, eps, "channels_first")
    assert jnp.allclose(y_cf, ref_cf, atol=1e-4, rtol=1e-4), "channels_first mismatch"

    # channels_last path (NHWC)
    x_cl = jax.random.normal(k2, (B, H, W, C), jnp.float32)
    y_cl = jax.block_until_ready(
        layer_norm(x_cl, weight, bias, eps=eps, data_format="channels_last"))
    ref_cl = _reference_layer_norm(x_cl, weight, bias, eps, "channels_last")
    assert jnp.allclose(y_cl, ref_cl, atol=1e-4, rtol=1e-4), "channels_last mismatch"

    print("KERNEL_OK")
</pallas_src>

<mosaic_0001>
module attributes {stable_mosaic.version = 11 : i64} {
  func.func @_ln_channel_kernel(%arg0: i32, %arg1: i32, %arg2: memref<1x32x128xf32, #tpu.memory_space<vmem>>, %arg3: memref<32x1xf32, #tpu.memory_space<vmem>>, %arg4: memref<32x1xf32, #tpu.memory_space<vmem>>, %arg5: memref<1x32x128xf32, #tpu.memory_space<vmem>>) attributes {dimension_semantics = [#tpu.dimension_semantics<parallel>, #tpu.dimension_semantics<parallel>], iteration_bounds = array<i64: 2, 2>, scalar_prefetch = 0 : i64, scratch_operands = 0 : i64, tpu.core_type = #tpu.core_type<tc>, window_params = [{transform_indices = @transform_0, window_bounds = array<i64: 1, 32, 128>}, {pipeline_mode = #tpu.pipeline_mode<synchronous>, transform_indices = @transform_1, window_bounds = array<i64: 32, 1>}, {pipeline_mode = #tpu.pipeline_mode<synchronous>, transform_indices = @transform_2, window_bounds = array<i64: 32, 1>}, {transform_indices = @transform_3, window_bounds = array<i64: 1, 32, 128>}]} {
    %c0 = arith.constant 0 : index
    %c0_0 = arith.constant 0 : index
    %c0_1 = arith.constant 0 : index
    %0 = vector.load %arg2[%c0, %c0_0, %c0_1] : memref<1x32x128xf32, #tpu.memory_space<vmem>>, vector<1x32x128xf32>
    %1 = vector.shape_cast %0 : vector<1x32x128xf32> to vector<32x128xf32>
    %cst = arith.constant dense<0.000000e+00> : vector<128xf32>
    %2 = vector.multi_reduction <add>, %1, %cst [0] : vector<32x128xf32> to vector<128xf32>
    %3 = vector.shape_cast %2 : vector<128xf32> to vector<1x128xf32>
    %cst_2 = arith.constant 3.200000e+01 : f32
    %4 = vector.broadcast %cst_2 : f32 to vector<1x128xf32>
    %5 = arith.divf %3, %4 : vector<1x128xf32>
    %6 = vector.broadcast %5 : vector<1x128xf32> to vector<32x128xf32>
    %7 = arith.subf %1, %6 : vector<32x128xf32>
    %8 = arith.mulf %7, %7 : vector<32x128xf32>
    %cst_3 = arith.constant dense<0.000000e+00> : vector<128xf32>
    %9 = vector.multi_reduction <add>, %8, %cst_3 [0] : vector<32x128xf32> to vector<128xf32>
    %10 = vector.shape_cast %9 : vector<128xf32> to vector<1x128xf32>
    %cst_4 = arith.constant 3.200000e+01 : f32
    %11 = vector.broadcast %cst_4 : f32 to vector<1x128xf32>
    %12 = arith.divf %10, %11 : vector<1x128xf32>
    %cst_5 = arith.constant 9.99999997E-7 : f32
    %13 = vector.broadcast %cst_5 : f32 to vector<1x128xf32>
    %14 = arith.addf %12, %13 : vector<1x128xf32>
    %15 = math.rsqrt %14 : vector<1x128xf32>
    %16 = vector.broadcast %15 : vector<1x128xf32> to vector<32x128xf32>
    %17 = arith.mulf %7, %16 : vector<32x128xf32>
    %c0_6 = arith.constant 0 : index
    %c0_7 = arith.constant 0 : index
    %18 = vector.load %arg3[%c0_6, %c0_7] : memref<32x1xf32, #tpu.memory_space<vmem>>, vector<32x1xf32>
    %c0_8 = arith.constant 0 : index
    %c0_9 = arith.constant 0 : index
    %19 = vector.load %arg4[%c0_8, %c0_9] : memref<32x1xf32, #tpu.memory_space<vmem>>, vector<32x1xf32>
    %20 = vector.broadcast %18 : vector<32x1xf32> to vector<32x128xf32>
    %21 = arith.mulf %17, %20 : vector<32x128xf32>
    %22 = vector.broadcast %19 : vector<32x1xf32> to vector<32x128xf32>
    %23 = arith.addf %21, %22 : vector<32x128xf32>
    %c0_10 = arith.constant 0 : index
    %c0_11 = arith.constant 0 : index
    %c0_12 = arith.constant 0 : index
    %24 = vector.load %arg5[%c0_10, %c0_11, %c0_12] : memref<1x32x128xf32, #tpu.memory_space<vmem>>, vector<1x32x128xf32>
    %25 = vector.shape_cast %24 : vector<1x32x128xf32> to vector<32x128xf32>
    %26 = vector.shape_cast %23 : vector<32x128xf32> to vector<1x32x128xf32>
    tpu.vector_store %arg5[%c0_10, %c0_11, %c0_12], %26 {strides = array<i32>} : memref<1x32x128xf32, #tpu.memory_space<vmem>>, vector<1x32x128xf32>,
    return
  }
  func.func @transform_0(%arg0: i32, %arg1: i32) -> (i32, i32, i32) {
    %c0_i32 = arith.constant 0 : i32
    %c0_i32_0 = arith.constant 0 : i32
    return %arg0, %c0_i32, %arg1 : i32, i32, i32
  }
  func.func @transform_1(%arg0: i32, %arg1: i32) -> (i32, i32) {
    %c0_i32 = arith.constant 0 : i32
    %c0_i32_0 = arith.constant 0 : i32
    %c0_i32_1 = arith.constant 0 : i32
    return %c0_i32, %c0_i32_0 : i32, i32
  }
  func.func @transform_2(%arg0: i32, %arg1: i32) -> (i32, i32) {
    %c0_i32 = arith.constant 0 : i32
    %c0_i32_0 = arith.constant 0 : i32
    %c0_i32_1 = arith.constant 0 : i32
    return %c0_i32, %c0_i32_0 : i32, i32
  }
  func.func @transform_3(%arg0: i32, %arg1: i32) -> (i32, i32, i32) {
    %c0_i32 = arith.constant 0 : i32
    %c0_i32_0 = arith.constant 0 : i32
    return %arg0, %c0_i32, %arg1 : i32, i32, i32
  }
}

</mosaic_0001>

<llo_original>
// kernel: tpu_custom_call.1
$region0: #{tpu_custom_call.1}
  #allocation0 [shape = 'u32[]', space=smem, size = 0x4, offset = 0x4, fixed_abs, tag = 'smem constant byte address 0x4 - core index']
  #allocation1 [shape = 'u32[144,128]{1,0:T(1,128)}', space=vmem, size = 0x12000, scoped, tag = 'internal scratch']
  %s0 = inlined_call_operand.hbm [shape: f32[2,32,256], index: 0, kind: input, shape index: {}]
  %s1 = inlined_call_operand.vmem [shape: f32[32,1], index: 1, kind: input, shape index: {}]
  %s2 = inlined_call_operand.vmem [shape: f32[32,1], index: 2, kind: input, shape index: {}]
  %s3 = inlined_call_operand.hbm [shape: f32[2,32,256], index: 3, kind: output, shape index: {}]
  %s4 = sld [smem:[#allocation0]]
  $region49: #{tpu_custom_call.1} parent=0
    _
  %s6 = ssub.s32 1, %s4
  %s7 = scalar_select 0, %s6, %s4
  $region1: #{tpu_custom_call.1} parent=0
    #allocation2 [shape = 'u8[32768]{0}', space=vmem, size = 0x8000, scoped, tag = 'input window, operand 0']
    #allocation3 [shape = 's32[2]{0}', space=sflag, size = 0x8, scoped, tag = 'scoped memory for tpu_custom_call.1']
    #allocation4 [shape = 's32[2]{0}', space=sflag, size = 0x8, scoped, tag = 'scoped memory for tpu_custom_call.1']
    #allocation5 [shape = 'u8[32768]{0}', space=vmem, size = 0x8000, scoped, tag = 'output window, operand 0']
    %8 = vsyncpa [#allocation3], 0
    %s9 = scalar_lea.sflag [#allocation3], 1
    %10 = vsyncpa %s9, 0
    %11 = vsyncpa [#allocation4], 0
    %s12 = scalar_lea.sflag [#allocation4], 1
    %13 = vsyncpa %s12, 0
    loop: start=0, step=1, limit=6
    $region2: #{tpu_custom_call.1} parent=1 // loop_pre_header
      _
    $region3: #{tpu_custom_call.1} parent=1 // loop_header
      %s15 = sphi 0, %s19
      %p16 = scmp.ge.s32.totalorder %s15, 6
      %s22 = sphi 0, %s34
      %s23 = sphi 0, %s30
      %s24 = sphi 0, %s22
      %s25 = sphi 0, %s23
      %s26 = sphi 0, %s24
      %s27 = sphi 0, %s25
      %s39 = sphi 0, %s41
      %s42 = sphi 0, %s39
      %s43 = sphi 0, %s42
      %s59 = sphi 0, %s43
      %s63 = sphi 0, %s63
      %s65 = sphi 0, %s63
      %s66 = sphi 0, %s65
      %s80 = sphi 0, %s66
      %s84 = sphi 0, %s84
      %s86 = sphi 0, %s84
      %s87 = sphi 0, %s86
      %s101 = sphi 0, %s87
      %s109 = sphi 0, %s111
      %s112 = sphi 0, %s109
      %s113 = sphi 0, %s112
      %s129 = sphi 0, %s113
    $region4: #{tpu_custom_call.1} parent=1 // loop_header_branch
      %18 = sbr.rel (%p16) target = $region8
    $region5: #{tpu_custom_call.1} parent=1 // loop_body
      %s20 = ssub.s32 %s15, 1
      %s21 = ssub.s32 %s15, 2
      %s28 = sadd.s32 1, %s23
      %p29 = scmp.ge.s32.totalorder %s28, 2
      %s30 = scalar_select %p29, 0, %s28
      %s31 = sadd.s32 1, %s22
      %s32 = scalar_select %p29, %s31, %s22
      %p33 = scmp.ge.s32.totalorder %s32, 2
      %s34 = scalar_select %p33, 0, %s32
      %s35 = ssub.s32 %s22, %s34
      %s36 = ssub.s32 %s23, %s30
      %s37 = sor.u32 %s35, %s36
      %p38 = scmp.eq.s32.totalorder %s37, 0
      %s40 = sadd.s32 %s39, 1
      %s41 = scalar_select %p38, %s39, %s40
      %p44 = pneg %p38
      %p45 = scmp.eq.s32.totalorder %s15, 3
      %p46 = por %p44, %p45
      %p47 = scmp.ne.s32.totalorder %s39, %s42
      %p48 = scmp.eq.s32.totalorder %s15, 0
      %p49 = por %p47, %p48
      %p50 = scmp.ne.s32.totalorder %s39, %s42
      %p51 = scmp.eq.s32.totalorder %s20, 3
      %p52 = por %p50, %p51
      %p53 = scmp.ne.s32.totalorder %s42, %s43
      %p54 = scmp.eq.s32.totalorder %s20, 0
      %p55 = por %p53, %p54
      %p56 = scmp.ne.s32.totalorder %s42, %s43
      %p57 = scmp.eq.s32.totalorder %s21, 3
      %p58 = por %p56, %p57
      %p60 = scmp.ne.s32.totalorder %s43, %s59
      %p61 = scmp.eq.s32.totalorder %s21, 0
      %p62 = por %p60, %p61
      %s64 = sadd.s32 %s63, 1
      %p67 = scmp.eq.s32.totalorder %s15, 3
      %p68 = scmp.ne.s32.totalorder %s63, %s65
      %p69 = scmp.eq.s32.totalorder %s15, 0
      %p70 = por %p68, %p69
      %p71 = scmp.ne.s32.totalorder %s63, %s65
      %p72 = scmp.eq.s32.totalorder %s20, 3
      %p73 = por %p71, %p72
      %p74 = scmp.ne.s32.totalorder %s65, %s66
      %p75 = scmp.eq.s32.totalorder %s20, 0
      %p76 = por %p74, %p75
      %p77 = scmp.ne.s32.totalorder %s65, %s66
      %p78 = scmp.eq.s32.totalorder %s21, 3
      %p79 = por %p77, %p78
      %p81 = scmp.ne.s32.totalorder %s66, %s80
      %p82 = scmp.eq.s32.totalorder %s21, 0
      %p83 = por %p81, %p82
      %s85 = sadd.s32 %s84, 1
      %p88 = scmp.eq.s32.totalorder %s15, 3
      %p89 = scmp.ne.s32.totalorder %s84, %s86
      %p90 = scmp.eq.s32.totalorder %s15, 0
      %p91 = por %p89, %p90
      %p92 = scmp.ne.s32.totalorder %s84, %s86
      %p93 = scmp.eq.s32.totalorder %s20, 3
      %p94 = por %p92, %p93
      %p95 = scmp.ne.s32.totalorder %s86, %s87
      %p96 = scmp.eq.s32.totalorder %s20, 0
      %p97 = por %p95, %p96
      %p98 = scmp.ne.s32.totalorder %s86, %s87
      %p99 = scmp.eq.s32.totalorder %s21, 3
      %p100 = por %p98, %p99
      %p102 = scmp.ne.s32.totalorder %s87, %s101
      %p103 = scmp.eq.s32.totalorder %s21, 0
      %p104 = por %p102, %p103
      %s105 = ssub.s32 %s22, %s34
      %s106 = ssub.s32 %s23, %s30
      %s107 = sor.u32 %s105, %s106
      %p108 = scmp.eq.s32.totalorder %s107, 0
      %s110 = sadd.s32 %s109, 1
      %s111 = scalar_select %p108, %s109, %s110
      %p114 = pneg %p108
      %p115 = scmp.eq.s32.totalorder %s15, 3
      %p116 = por %p114, %p115
      %p117 = scmp.ne.s32.totalorder %s109, %s112
      %p118 = scmp.eq.s32.totalorder %s15, 0
      %p119 = por %p117, %p118
      %p120 = scmp.ne.s32.totalorder %s109, %s112
      %p121 = scmp.eq.s32.totalorder %s20, 3
      %p122 = por %p120, %p121
      %p123 = scmp.ne.s32.totalorder %s112, %s113
      %p124 = scmp.eq.s32.totalorder %s20, 0
      %p125 = por %p123, %p124
      %p126 = scmp.ne.s32.totalorder %s112, %s113
      %p127 = scmp.eq.s32.totalorder %s21, 3
      %p128 = por %p126, %p127
      %p130 = scmp.ne.s32.totalorder %s113, %s129
      %p131 = scmp.eq.s32.totalorder %s21, 0
      %p132 = por %p130, %p131
      %p133 = scmp.le.s32.totalorder 1, %s15
      %p134 = scmp.lt.s32.totalorder %s15, 5
      %p135 = pnand %p133, %p134
      %p136 = pneg %p135
      // Predicated region
      $region9: #{tpu_custom_call.1} parent=5 // pred_check
        _
      $region10: #{tpu_custom_call.1} parent=5 // pred_check_branch
        %138 = sbr.rel (%p135) target = $region12
      $region11: #{tpu_custom_call.1} parent=5 // pred_region
        %s139 = ssub.s32 %s15, 1
        // Predicated region
        $region13: #{tpu_custom_call.1} parent=11 // pred_check
          %p140 = pneg %p76
        $region14: #{tpu_custom_call.1} parent=11 // pred_check_branch
          %142 = sbr.rel (%p140) target = $region16
        $region15: #{tpu_custom_call.1} parent=11 // pred_region
          _
        $region16: #{tpu_custom_call.1} parent=11 // pred_fallthru
          _
        // Predicated region
        $region17: #{tpu_custom_call.1} parent=11 // pred_check
          %p143 = pneg %p97
        $region18: #{tpu_custom_call.1} parent=11 // pred_check_branch
          %145 = sbr.rel (%p143) target = $region20
        $region19: #{tpu_custom_call.1} parent=11 // pred_region
          _
        $region20: #{tpu_custom_call.1} parent=11 // pred_fallthru
          _
      $region12: #{tpu_custom_call.1} parent=5 // pred_fallthru
        _
      %p146 = scmp.lt.s32.totalorder %s15, 4
      // Predicated region
      $region21: #{tpu_custom_call.1} parent=5 // pred_check
        %p147 = pneg %p146
      $region22: #{tpu_custom_call.1} parent=5 // pred_check_branch
        %149 = sbr.rel (%p147) target = $region24
      $region23: #{tpu_custom_call.1} parent=5 // pred_region
        // Predicated region
        $region25: #{tpu_custom_call.1} parent=23 // pred_check
          %p150 = pneg %p49
        $region26: #{tpu_custom_call.1} parent=23 // pred_check_branch
          %152 = sbr.rel (%p150) target = $region28
        $region27: #{tpu_custom_call.1} parent=23 // pred_region
          %s153 = sand.u32 %s39, 1
          %s154 = scalar_lea.sflag [#allocation3], %s153
          %s155 = sand.u32 %s39, 1
          %s156 = smul.addr %s155, 32
          %s157 = scalar_lea.vmem [#allocation2], %s156
          %s159 = ssub.s32 512, 512
          %160 = vsyncadd %s154, %s159
          %s161 = smul.addr %s22, 8
          %s162 = sadd.s32 %s23, %s161
          %s163 = smul.addr %s162, 128
          %s164 = scalar_lea.hbm %s0, %s163
          %s165 = sshll.u32 %s157, 4
          %s166 = int_to_ptr.vmem [resolvable:$true] %s165
          %171 = dma.hbm_to_vmem [thread:$0]  %s164, 512, %s166, %s154, 256, 128, 8
        $region28: #{tpu_custom_call.1} parent=23 // pred_fallthru
          _
      $region24: #{tpu_custom_call.1} parent=5 // pred_fallthru
        _
      %p172 = scmp.le.s32.totalorder 1, %s15
      %p173 = scmp.lt.s32.totalorder %s15, 5
      %p174 = pnand %p172, %p173
      %p175 = pneg %p174
      // Predicated region
      $region29: #{tpu_custom_call.1} parent=5 // pred_check
        _
      $region30: #{tpu_custom_call.1} parent=5 // pred_check_branch
        %177 = sbr.rel (%p174) target = $region32
      $region31: #{tpu_custom_call.1} parent=5 // pred_region
        %s178 = ssub.s32 %s15, 1
        %s179 = sand.u32 %s42, 1
        %s180 = scalar_lea.sflag [#allocation3], %s179
        %s181 = sand.u32 %s42, 1
        %s182 = smul.addr %s181, 32
        %s183 = scalar_lea.vmem [#allocation2], %s182
        // Predicated region
        $region33: #{tpu_custom_call.1} parent=31 // pred_check
          %p184 = pneg %p55
        $region34: #{tpu_custom_call.1} parent=31 // pred_check_branch
          %186 = sbr.rel (%p184) target = $region36
        $region35: #{tpu_custom_call.1} parent=31 // pred_region
          %187 = dma.done %s180, 512
        $region36: #{tpu_custom_call.1} parent=31 // pred_fallthru
          _
        %s188 = sand.u32 %s42, 1
        %s189 = scalar_lea.sflag [#allocation3], %s188
        %s190 = sand.u32 %s42, 1
        %s191 = smul.addr %s190, 32
        %s192 = scalar_lea.vmem [#allocation2], %s191
        %p193 = pneg %p55
        %p194 = pneg %p52
        %p195 = pneg %p76
        %p196 = pneg %p73
        %p197 = pneg %p97
        %p198 = pneg %p94
        %p199 = pneg %p125
        %p200 = pneg %p122
        %s201 = sand.u32 %s112, 1
        %s202 = scalar_lea.sflag [#allocation4], %s201
        %s203 = sand.u32 %s112, 1
        %s204 = smul.addr %s203, 32
        %s205 = scalar_lea.vmem [#allocation5], %s204
        %v206 = vld [vmem:[%s183] sm:$0xff]
        %v207 = vld [vmem:[%s183 + $0x8] sm:$0xff]
        %v208 = vld [vmem:[%s183 + $0x10] sm:$0xff]
        %v209 = vld [vmem:[%s183 + $0x18] sm:$0xff]
        %v210 = vadd.f32 %v206, %v207
        %v211 = vadd.f32 %v210, %v208
        %v212 = vadd.f32 %v211, %v209
        %v213 = vrot.slane %v212, 4
        %v214 = vadd.f32 %v212, %v213
        %v215 = vrot.slane %v214, 2
        %v216 = vadd.f32 %v214, %v215
        %v217 = vrot.slane %v216, 1
        %v218 = vadd.f32 %v216, %v217
        %v219 = vrcp.pop 32.0
        %v220 = vmul.f32 %v218, %v219
        %v221 = vsub.f32 %v206, %v220
        %v222 = vsub.f32 %v207, %v220
        %v223 = vsub.f32 %v208, %v220
        %v224 = vsub.f32 %v209, %v220
        %v225 = vmul.f32 %v221, %v221
        %v226 = vmul.f32 %v222, %v222
        %v227 = vmul.f32 %v223, %v223
        %v228 = vmul.f32 %v224, %v224
        %v229 = vadd.f32 %v225, %v226
        %v230 = vadd.f32 %v229, %v227
        %v231 = vadd.f32 %v230, %v228
        %v232 = vrot.slane %v231, 4
        %v233 = vadd.f32 %v231, %v232
        %v234 = vrot.slane %v233, 2
        %v235 = vadd.f32 %v233, %v234
        %v236 = vrot.slane %v235, 1
        %v237 = vadd.f32 %v235, %v236
        %v238 = vmul.f32 %v237, %v219
        %v239 = vadd.f32 %v238, 1e-06
        %v240 = vrsqrt.pop %v239
        %v241 = vmul.f32 %v221, %v240
        %v242 = vmul.f32 %v222, %v240
        %v243 = vmul.f32 %v223, %v240
        %v244 = vmul.f32 %v224, %v240
        %v245 = vld [vmem:[%s1] sm:$0xff]
        %v246 = vld [vmem:[%s1 + $0x8] sm:$0xff]
        %v247 = vld [vmem:[%s1 + $0x10] sm:$0xff]
        %v248 = vld [vmem:[%s1 + $0x18] sm:$0xff]
        %v249 = vld [vmem:[%s2] sm:$0xff]
        %v250 = vld [vmem:[%s2 + $0x8] sm:$0xff]
        %v251 = vld [vmem:[%s2 + $0x10] sm:$0xff]
        %v252 = vld [vmem:[%s2 + $0x18] sm:$0xff]
        %254 = vset.pattern.permute.xlu0 0
        %255 = vperm.xlu0 %254, %v245
        %v256 = vpop.permute.xlu0 %255
        %259 = vset.pattern.permute.xlu0 0
        %260 = vperm.xlu0 %259, %v246
        %v261 = vpop.permute.xlu0 %260
        %264 = vset.pattern.permute.xlu0 0
        %265 = vperm.xlu0 %264, %v247
        %v266 = vpop.permute.xlu0 %265
        %269 = vset.pattern.permute.xlu0 0
        %270 = vperm.xlu0 %269, %v248
        %v271 = vpop.permute.xlu0 %270
        %v273 = vmul.f32 %v241, %v256
        %v274 = vmul.f32 %v242, %v261
        %v275 = vmul.f32 %v243, %v266
        %v276 = vmul.f32 %v244, %v271
        %278 = vset.pattern.permute.xlu0 0
        %279 = vperm.xlu0 %278, %v249
        %v280 = vpop.permute.xlu0 %279
        %283 = vset.pattern.permute.xlu0 0
        %284 = vperm.xlu0 %283, %v250
        %v285 = vpop.permute.xlu0 %284
        %288 = vset.pattern.permute.xlu0 0
        %289 = vperm.xlu0 %288, %v251
        %v290 = vpop.permute.xlu0 %289
        %293 = vset.pattern.permute.xlu0 0
        %294 = vperm.xlu0 %293, %v252
        %v295 = vpop.permute.xlu0 %294
        %v297 = vadd.f32 %v273, %v280
        %v298 = vadd.f32 %v274, %v285
        %v299 = vadd.f32 %v275, %v290
        %v300 = vadd.f32 %v276, %v295
        %301 = vst [vmem:[%s205] sm:$0xff] %v297
        %302 = vst [vmem:[%s205 + $0x8] sm:$0xff] %v298
        %303 = vst [vmem:[%s205 + $0x10] sm:$0xff] %v299
        %304 = vst [vmem:[%s205 + $0x18] sm:$0xff] %v300
        %s305 = sand.u32 %s112, 1
        %s306 = scalar_lea.sflag [#allocation4], %s305
        %s307 = sand.u32 %s112, 1
        %s308 = smul.addr %s307, 32
        %s309 = scalar_lea.vmem [#allocation5], %s308
        // Predicated region
        $region37: #{tpu_custom_call.1} parent=31 // pred_check
          %p310 = pneg %p122
        $region38: #{tpu_custom_call.1} parent=31 // pred_check_branch
          %312 = sbr.rel (%p310) target = $region40
        $region39: #{tpu_custom_call.1} parent=31 // pred_region
          %s314 = ssub.s32 512, 512
          %315 = vsyncadd %s306, %s314
          %s316 = smul.addr %s24, 8
          %s317 = sadd.s32 %s25, %s316
          %s318 = smul.addr %s317, 128
          %s319 = scalar_lea.hbm %s3, %s318
          %s320 = sshll.u32 %s309, 4
          %s321 = int_to_ptr.vmem [resolvable:$true] %s320
          %326 = dma.vmem_to_hbm [thread:$0]  %s321, 512, %s319, %s306, 128, 256, 8
        $region40: #{tpu_custom_call.1} parent=31 // pred_fallthru
          _
      $region32: #{tpu_custom_call.1} parent=5 // pred_fallthru
        _
      %p327 = scmp.le.s32.totalorder 2, %s15
      // Predicated region
      $region41: #{tpu_custom_call.1} parent=5 // pred_check
        %p328 = pneg %p327
      $region42: #{tpu_custom_call.1} parent=5 // pred_check_branch
        %330 = sbr.rel (%p328) target = $region44
      $region43: #{tpu_custom_call.1} parent=5 // pred_region
        %s331 = ssub.s32 %s15, 2
        // Predicated region
        $region45: #{tpu_custom_call.1} parent=43 // pred_check
          %p332 = pneg %p128
        $region46: #{tpu_custom_call.1} parent=43 // pred_check_branch
          %334 = sbr.rel (%p332) target = $region48
        $region47: #{tpu_custom_call.1} parent=43 // pred_region
          %s335 = sand.u32 %s113, 1
          %s336 = scalar_lea.sflag [#allocation4], %s335
          %s337 = sand.u32 %s113, 1
          %s338 = smul.addr %s337, 32
          %s339 = scalar_lea.vmem [#allocation5], %s338
          %340 = dma.done %s336, 512
        $region48: #{tpu_custom_call.1} parent=43 // pred_fallthru
          _
      $region44: #{tpu_custom_call.1} parent=5 // pred_fallthru
        _
    $region6: #{tpu_custom_call.1} parent=1 // loop_footer
      %s19 = sadd.s32 1, %s15
    $region7: #{tpu_custom_call.1} parent=1 // loop_footer_branch
      %14 = sbr.rel target = $region3
    $region8: #{tpu_custom_call.1} parent=1 // loop_exit
      _
    %341 = vsyncpa [#allocation3], 1
    %s342 = scalar_lea.sflag [#allocation3], 1
    %343 = vsyncpa %s342, 1
    %344 = vsyncpa [#allocation4], 1
    %s345 = scalar_lea.sflag [#allocation4], 1
    %346 = vsyncpa %s345, 1

</llo_original>
